<compile_context>
chip_gen: v6e
topology: v6e:2x2x1
jax: 0.10.0
libtpu: 0.0.40
codegen_flags: <defaults>
</compile_context>

<pallas_src>
import jax
import jax.numpy as jnp
from jax.experimental import pallas as pl
from jax.experimental.pallas import tpu as pltpu

_LANE = 128
_SUB = 8
_TARGET_BLOCK_BYTES = 2 * 1024 * 1024   # ~2 MiB/block -> ~8 MiB double-buffered


def _mtact_kernel(abc_ref, x_ref, o_ref):
    # abc_ref lives in SMEM: precomputed [A, B, C] (f32 scalars).
    A = abc_ref[0]
    B = abc_ref[1]
    C = abc_ref[2]
    # I/O stays in the input's native dtype; compute in f32 in-vreg
    # (also keeps v5e happy: its VPU/EUP have no bf16 path).
    x = x_ref[...].astype(jnp.float32)
    y = (A * x + B) * (jnp.tanh(C * x) + 1.0)
    o_ref[...] = y.astype(o_ref.dtype)


def _choose_lane_width(n):
    """Largest multiple-of-128 lane width dividing n (prefer >= 8 rows)."""
    for cand in (2048, 1024, 512, 256, 128):
        if n % cand == 0 and (n // cand) >= _SUB:
            return cand
    for cand in (2048, 1024, 512, 256, 128):
        if n % cand == 0:
            return cand
    return None          # awkward n -> pad-to-128 fallback


def _choose_tile_rows(rows, bytes_per_row):
    """MB-scale blocks; >= 2 grid steps when the slab is large enough."""
    tile = max(_SUB, _TARGET_BLOCK_BYTES // bytes_per_row)
    tile -= tile % _SUB
    if rows >= 2 * _SUB:
        # Cap at ~half the rows so the 1-D "parallel" axis has >= 2 steps
        # (lets v7x shard the grid across both TensorCores).
        half = -(-rows // 2)
        half = ((half + _SUB - 1) // _SUB) * _SUB
        tile = min(tile, half)
    if tile >= rows:
        tile = rows          # single full-extent block (small inputs)
    return tile


def mtact(x, alpha, beta):
    """Elementwise mTACT. x: any shape (e.g. NCHW). alpha, beta: scalars."""
    orig_shape = x.shape
    dtype = x.dtype
    n = x.size

    # Precompute the three scalar constants once in the wrapper (f32 -> SMEM).
    alpha = jnp.asarray(alpha, jnp.float32)
    beta = jnp.asarray(beta, jnp.float32)
    A = 0.5 * alpha * alpha
    B = 0.5 - A
    C = 0.5 * (1.0 + beta * beta)
    abc = jnp.stack([A, B, C])

    # Lane-dense slab (rows, W); pad only when n is not a multiple of 128.
    W = _choose_lane_width(n)
    flat = x.reshape(-1)
    pad = 0
    if W is None:
        W = _LANE
        pad = (-n) % W
        flat = jnp.pad(flat, (0, pad))
    rows = (n + pad) // W
    x2 = flat.reshape(rows, W)

    bytes_per_row = W * jnp.dtype(dtype).itemsize
    tile_rows = _choose_tile_rows(rows, bytes_per_row)
    grid = (pl.cdiv(rows, tile_rows),)

    out2 = pl.pallas_call(
        _mtact_kernel,
        out_shape=jax.ShapeDtypeStruct((rows, W), dtype),
        grid_spec=pltpu.PrefetchScalarGridSpec(
            num_scalar_prefetch=0,
            grid=grid,
            in_specs=[
                pl.BlockSpec(memory_space=pltpu.SMEM),               # [A,B,C]
                pl.BlockSpec((tile_rows, W), lambda i: (i, 0)),      # x tile
            ],
            out_specs=pl.BlockSpec((tile_rows, W), lambda i: (i, 0)),
        ),
        compiler_params=pltpu.CompilerParams(
            dimension_semantics=("parallel",),
            # ~8 MiB of double-buffered blocks; 32 MiB fits v5e/v6e/v7x.
            vmem_limit_bytes=32 * 1024 * 1024,
        ),
    )(abc, x2)

    if pad:
        out = out2.reshape(-1)[:n]
    else:
        out = out2
    return out.reshape(orig_shape)


def mtact_reference(x, alpha, beta):
    xf = x.astype(jnp.float32)
    A = 0.5 * alpha * alpha
    B = 0.5 - A
    C = 0.5 * (1.0 + beta * beta)
    return ((A * xf + B) * (jnp.tanh(C * xf) + 1.0)).astype(x.dtype)


if __name__ == "__main__":
    key = jax.random.PRNGKey(0)
    kx, ka, kb = jax.random.split(key, 3)

    # Module __init__: alpha, beta ~ Uniform(0, 0.5); deterministic here.
    alpha = jax.random.uniform(ka, (), minval=0.0, maxval=0.5)
    beta = jax.random.uniform(kb, (), minval=0.0, maxval=0.5)

    # NCHW input, small shapes consistent with a CIFAR-10-style activation.
    x = jax.random.normal(kx, (2, 4, 16, 16), dtype=jnp.float32)

    out = mtact(x, alpha, beta)
    out = jax.block_until_ready(out)

    ref = mtact_reference(x, alpha, beta)
    assert out.shape == x.shape and out.dtype == x.dtype
    assert jnp.allclose(out, ref, atol=1e-5, rtol=1e-5)

    print("KERNEL_OK")
</pallas_src>

<mosaic_0001>
module attributes {stable_mosaic.version = 11 : i64} {
  func.func @_mtact_kernel(%arg0: i32, %arg1: memref<3xf32, #tpu.memory_space<smem>>, %arg2: memref<8x256xf32, #tpu.memory_space<vmem>>, %arg3: memref<8x256xf32, #tpu.memory_space<vmem>>) attributes {dimension_semantics = [#tpu.dimension_semantics<parallel>], iteration_bounds = array<i64: 1>, scalar_prefetch = 0 : i64, scratch_operands = 0 : i64, tpu.core_type = #tpu.core_type<tc>, window_params = [{transform_indices = @transform_0, window_bounds = array<i64: 3>}, {transform_indices = @transform_1, window_bounds = array<i64: 8, 256>}, {transform_indices = @transform_2, window_bounds = array<i64: 8, 256>}]} {
    %c0 = arith.constant 0 : index
    %0 = memref.load %arg1[%c0] : memref<3xf32, #tpu.memory_space<smem>>
    %c1 = arith.constant 1 : index
    %1 = memref.load %arg1[%c1] : memref<3xf32, #tpu.memory_space<smem>>
    %c2 = arith.constant 2 : index
    %2 = memref.load %arg1[%c2] : memref<3xf32, #tpu.memory_space<smem>>
    %c0_0 = arith.constant 0 : index
    %c0_1 = arith.constant 0 : index
    %3 = vector.load %arg2[%c0_0, %c0_1] : memref<8x256xf32, #tpu.memory_space<vmem>>, vector<8x256xf32>
    %4 = vector.broadcast %0 : f32 to vector<8x256xf32>
    %5 = arith.mulf %4, %3 : vector<8x256xf32>
    %6 = vector.broadcast %1 : f32 to vector<8x256xf32>
    %7 = arith.addf %5, %6 : vector<8x256xf32>
    %8 = vector.broadcast %2 : f32 to vector<8x256xf32>
    %9 = arith.mulf %8, %3 : vector<8x256xf32>
    %10 = math.tanh %9 : vector<8x256xf32>
    %cst = arith.constant 1.000000e+00 : f32
    %11 = vector.broadcast %cst : f32 to vector<8x256xf32>
    %12 = arith.addf %10, %11 : vector<8x256xf32>
    %13 = arith.mulf %7, %12 : vector<8x256xf32>
    %c0_2 = arith.constant 0 : index
    %c0_3 = arith.constant 0 : index
    %14 = vector.load %arg3[%c0_2, %c0_3] : memref<8x256xf32, #tpu.memory_space<vmem>>, vector<8x256xf32>
    tpu.vector_store %arg3[%c0_2, %c0_3], %13 {strides = array<i32>} : memref<8x256xf32, #tpu.memory_space<vmem>>, vector<8x256xf32>,
    return
  }
  func.func @transform_0(%arg0: i32) -> i32 {
    %c0_i32 = arith.constant 0 : i32
    %c0_i32_0 = arith.constant 0 : i32
    return %c0_i32 : i32
  }
  func.func @transform_1(%arg0: i32) -> (i32, i32) {
    %c0_i32 = arith.constant 0 : i32
    %c0_i32_0 = arith.constant 0 : i32
    return %arg0, %c0_i32 : i32, i32
  }
  func.func @transform_2(%arg0: i32) -> (i32, i32) {
    %c0_i32 = arith.constant 0 : i32
    %c0_i32_0 = arith.constant 0 : i32
    return %arg0, %c0_i32 : i32, i32
  }
}

</mosaic_0001>

<llo_original>
// kernel: tpu_custom_call.1
$region0: #{tpu_custom_call.1}
  #allocation0 [shape = 'u32[]', space=smem, size = 0x4, offset = 0x4, fixed_abs, tag = 'smem constant byte address 0x4 - core index']
  #allocation1 [shape = 'u32[144,128]{1,0:T(1,128)}', space=vmem, size = 0x12000, scoped, tag = 'internal scratch']
  %s0 = inlined_call_operand.hbm [shape: f32[3], index: 0, kind: input, shape index: {}]
  %s1 = inlined_call_operand.hbm [shape: f32[8,256], index: 1, kind: input, shape index: {}]
  %s2 = inlined_call_operand.hbm [shape: f32[8,256], index: 2, kind: output, shape index: {}]
  %s3 = sld [smem:[#allocation0]]
  $region26: #{tpu_custom_call.1} parent=0
    _
  %s5 = ssub.s32 1, %s3
  %s6 = scalar_select 0, %s5, %s3
  $region1: #{tpu_custom_call.1} parent=0
    #allocation2 [shape = 'u8[512]{0}', space=smem, size = 0x200, scoped, tag = 'input window, operand 0, single buffered']
    #allocation3 [shape = 's32[1]{0}', space=sflag, size = 0x4, scoped, tag = 'scoped memory for tpu_custom_call.1']
    #allocation4 [shape = 's32[1]{0}', space=sflag, size = 0x4, scoped, tag = 'scoped memory for tpu_custom_call.1']
    #allocation5 [shape = 's32[1]{0}', space=sflag, size = 0x4, scoped, tag = 'scoped memory for tpu_custom_call.1']
    #allocation6 [shape = 'u8[8192]{0}', space=vmem, size = 0x2000, scoped, tag = 'input window, operand 1, single buffered']
    #allocation7 [shape = 'u8[8192]{0}', space=vmem, size = 0x2000, scoped, tag = 'output window, operand 0, single buffered']
    %7 = vsyncpa [#allocation5], 0
    %8 = vsyncpa [#allocation3], 0
    %9 = vsyncpa [#allocation4], 0
    // Predicated region
    $region2: #{tpu_custom_call.1} parent=1 // pred_check
      _
    $region3: #{tpu_custom_call.1} parent=1 // pred_check_branch
      %11 = sbr.rel (0) target = $region5
    $region4: #{tpu_custom_call.1} parent=1 // pred_region
      %s13 = ssub.s32 16, 16
      %14 = vsyncadd [#allocation5], %s13
      %17 = dma.hbm_to_smem %s0, 16, [#allocation2], [#allocation5]
    $region5: #{tpu_custom_call.1} parent=1 // pred_fallthru
      _
    // Predicated region
    $region6: #{tpu_custom_call.1} parent=1 // pred_check
      _
    $region7: #{tpu_custom_call.1} parent=1 // pred_check_branch
      %19 = sbr.rel (0) target = $region9
    $region8: #{tpu_custom_call.1} parent=1 // pred_region
      %s21 = ssub.s32 256, 256
      %22 = vsyncadd [#allocation3], %s21
      %s24 = sshll.u32 [#allocation6], 4
      %s25 = int_to_ptr.vmem [resolvable:$true] %s24
      %27 = dma.hbm_to_vmem [thread:$0]  %s1, 256, %s25, [#allocation3]
    $region9: #{tpu_custom_call.1} parent=1 // pred_fallthru
      _
    // Predicated region
    $region10: #{tpu_custom_call.1} parent=1 // pred_check
      _
    $region11: #{tpu_custom_call.1} parent=1 // pred_check_branch
      %29 = sbr.rel (0) target = $region13
    $region12: #{tpu_custom_call.1} parent=1 // pred_region
      %30 = dma.done [#allocation5], 16
    $region13: #{tpu_custom_call.1} parent=1 // pred_fallthru
      _
    // Predicated region
    $region14: #{tpu_custom_call.1} parent=1 // pred_check
      _
    $region15: #{tpu_custom_call.1} parent=1 // pred_check_branch
      %32 = sbr.rel (0) target = $region17
    $region16: #{tpu_custom_call.1} parent=1 // pred_region
      %33 = dma.done [#allocation3], 256
    $region17: #{tpu_custom_call.1} parent=1 // pred_fallthru
      _
    %34 = sfence
    %s35 = sld [smem:[#allocation2]]
    %s36 = sld [smem:[#allocation2 + $0x1]]
    %s37 = sld [smem:[#allocation2 + $0x2]]
    %v38 = vld [vmem:[#allocation6] sm:$0xff]
    %v39 = vld [vmem:[#allocation6 + $0x8] sm:$0xff]
    %v40 = vstv %s35
    %v41 = vmul.f32 %v40, %v38
    %v42 = vmul.f32 %v40, %v39
    %v43 = vstv %s36
    %v44 = vadd.f32 %v41, %v43
    %v45 = vadd.f32 %v42, %v43
    %v46 = vstv %s37
    %v47 = vmul.f32 %v46, %v38
    %v48 = vmul.f32 %v46, %v39
    %v49 = vtanh.pop %v47
    %v50 = vtanh.pop %v48
    %v51 = vadd.f32 %v49, 1.0
    %v52 = vadd.f32 %v50, 1.0
    %v53 = vmul.f32 %v44, %v51
    %v54 = vmul.f32 %v45, %v52
    %55 = vst [vmem:[#allocation7] sm:$0xff] %v53
    %56 = vst [vmem:[#allocation7 + $0x8] sm:$0xff] %v54
    // Predicated region
    $region18: #{tpu_custom_call.1} parent=1 // pred_check
      _
    $region19: #{tpu_custom_call.1} parent=1 // pred_check_branch
      %58 = sbr.rel (0) target = $region21
    $region20: #{tpu_custom_call.1} parent=1 // pred_region
      %s60 = ssub.s32 256, 256
      %61 = vsyncadd [#allocation4], %s60
      %s63 = sshll.u32 [#allocation7], 4
      %s64 = int_to_ptr.vmem [resolvable:$true] %s63
      %66 = dma.vmem_to_hbm [thread:$0]  %s64, 256, %s2, [#allocation4]
    $region21: #{tpu_custom_call.1} parent=1 // pred_fallthru
      _
    // Predicated region
    $region22: #{tpu_custom_call.1} parent=1 // pred_check
      _
    $region23: #{tpu_custom_call.1} parent=1 // pred_check_branch
      %68 = sbr.rel (0) target = $region25
    $region24: #{tpu_custom_call.1} parent=1 // pred_region
      %69 = dma.done [#allocation4], 256
    $region25: #{tpu_custom_call.1} parent=1 // pred_fallthru
      _
    %70 = vsyncpa [#allocation3], 1
    %71 = vsyncpa [#allocation4], 1
    %72 = vsyncpa [#allocation5], 1

</llo_original>
